<compile_context>
chip_gen: v6e
topology: v6e:2x2x1
jax: 0.10.0
libtpu: 0.0.40
codegen_flags: <defaults>
</compile_context>

<pallas_src>
import functools

import jax
import jax.numpy as jnp
from jax.experimental import pallas as pl
from jax.experimental.pallas import tpu as pltpu


def _cla_loss_kernel(logits_ref, labels_ref, partial_ref, *,
                     n_total, tile_n, exp_dtype):
    # logits_ref:  (tile_n, C) native dtype, VMEM.  The last block may be
    #              partial; rows >= n_total contain undefined data (masked).
    # labels_ref:  (tile_n, 1) int32, VMEM.
    # partial_ref: (1, 1) f32, SMEM — per-tile partial sum (grid is parallel).
    i = pl.program_id(0)

    logits_raw = logits_ref[...]                              # native dtype
    logits = logits_raw.astype(jnp.float32)                   # in-register upcast
    labels = labels_ref[...]                                  # (tile_n, 1) int32
    c = logits.shape[-1]

    # Row validity for the (possibly partial) last block.  max/sum are per-row,
    # so garbage/NaN in invalid rows cannot leak into valid rows; invalid rows
    # are discarded with a select (never multiply-by-zero).
    row_ids = i * tile_n + jax.lax.broadcasted_iota(jnp.int32, (tile_n, 1), 0)
    valid = row_ids < n_total

    # Numerically stable per-row logsumexp (exp optionally in bf16 on v6e/v7x).
    row_max = jnp.max(logits, axis=-1, keepdims=True)
    shifted = logits - row_max
    if exp_dtype == jnp.float32:
        exps = jnp.exp(shifted)
    else:
        exps = jnp.exp(shifted.astype(exp_dtype)).astype(jnp.float32)
    lse = jnp.log(jnp.sum(exps, axis=-1, keepdims=True)) + row_max  # (tile_n, 1)

    # One-hot target gather on the native-dtype tile (exact: one nonzero/row).
    # NOTE: labels must be valid class ids in [0, C); PyTorch's
    # ignore_index=-100 is not supported (CLALoss never produces it).
    cls_idx = jax.lax.broadcasted_iota(jnp.int32, (1, c), 1)
    zero = jnp.zeros((), dtype=logits_raw.dtype)
    tgt = jnp.sum(jnp.where(cls_idx == labels, logits_raw, zero),
                  axis=-1, keepdims=True).astype(jnp.float32)        # (tile_n, 1)

    per_example = jnp.where(valid, lse - tgt, 0.0)
    partial_ref[0, 0] = jnp.sum(per_example)


# Per-buffer VMEM byte budget for the logits tile (multi-MiB tiles sit at
# ~85% of the HBM roofline for streaming kernels).
_LOGITS_TILE_BYTES = 4 * 1024 * 1024
_MAX_TILE_N = 8192               # byte budget is the real limiter
_MIN_PALLAS_ELEMS = 16 * 1024    # below this, pallas_call overhead dominates


def _supports_bf16_eup():
    # bf16 transcendentals exist on v6e/v7x EUPs, not on v5e or older.
    try:
        kind = jax.devices()[0].device_kind.lower()
    except Exception:
        return False
    return not any(v in kind for v in ("v2", "v3", "v4", "v5"))


def cla_loss(outputs, labels, *, use_pallas=None, tile_n_cap=None):
    """outputs: [N, C] float logits (any float dtype); labels: [N] class ids.

    Returns (loss, {'loss': loss}) matching CLALoss.forward.
    """
    n, c = outputs.shape

    if use_pallas is None:
        use_pallas = (n * c) >= _MIN_PALLAS_ELEMS
    if not use_pallas:
        # Tiny problems: XLA's fused logsumexp beats the custom-call overhead.
        lg = outputs.astype(jnp.float32)
        lse = jax.nn.logsumexp(lg, axis=-1)
        tgt = jnp.take_along_axis(lg, labels.astype(jnp.int32)[:, None], axis=-1)[:, 0]
        loss = jnp.mean(lse - tgt)
        return loss, {'loss': loss}

    labels2d = labels.astype(jnp.int32).reshape(n, 1)

    # --- tile sizing: dtype-aware sublane multiple, bounded by the byte budget
    itemsize = jnp.dtype(outputs.dtype).itemsize
    sublane = {4: 8, 2: 16, 1: 32}.get(itemsize, 8)
    bytes_per_row = max(c * itemsize, 1)
    budget_rows = max(sublane,
                      (_LOGITS_TILE_BYTES // bytes_per_row) // sublane * sublane)
    max_rows = min(_MAX_TILE_N, budget_rows)
    if tile_n_cap is not None:  # test hook to force multi-tile / ragged paths
        max_rows = min(max_rows, max(sublane, tile_n_cap // sublane * sublane))
    if n <= max_rows:
        tile_n = n           # single block == full dim (always layout-legal)
    else:
        tile_n = max_rows    # sublane-aligned; last block may be partial
    num_tiles = int(pl.cdiv(n, tile_n))

    # VMEM footprint: 2x double-buffered native tile + ~2x f32 temporaries
    # (upcast copy + exp intermediate) + small label buffers.  Keep below the
    # v7x 64 MiB physical ceiling; v5e/v6e have plenty of headroom.
    tile_bytes = tile_n * c * itemsize
    f32_tile_bytes = tile_n * c * 4
    vmem_need = 2 * tile_bytes + 2 * f32_tile_bytes + 4 * tile_n * 4
    vmem_limit = int(min(max(32 << 20, int(vmem_need * 1.5)), 56 << 20))

    # bf16 exp only when inputs are already bf16 (precision already ~1e-3) and
    # the chip has a bf16 EUP (v6e/v7x); f32 path everywhere else (incl. v5e).
    exp_dtype = (jnp.bfloat16
                 if outputs.dtype == jnp.bfloat16 and _supports_bf16_eup()
                 else jnp.float32)

    kernel = functools.partial(_cla_loss_kernel, n_total=n, tile_n=tile_n,
                               exp_dtype=exp_dtype)

    partials = pl.pallas_call(
        kernel,
        out_shape=jax.ShapeDtypeStruct((num_tiles, 1), jnp.float32),
        grid=(num_tiles,),
        in_specs=[
            pl.BlockSpec((tile_n, c), lambda i: (i, 0), memory_space=pltpu.VMEM),
            pl.BlockSpec((tile_n, 1), lambda i: (i, 0), memory_space=pltpu.VMEM),
        ],
        # Per-tile partial sums (no revisited accumulator) -> safe under
        # "parallel"; on v7x the grid shards across both TensorCores.
        out_specs=pl.BlockSpec((1, 1), lambda i: (i, 0), memory_space=pltpu.SMEM),
        compiler_params=pltpu.CompilerParams(
            dimension_semantics=("parallel",),
            vmem_limit_bytes=vmem_limit,
        ),
        cost_estimate=pl.CostEstimate(
            flops=5 * n * c,
            transcendentals=n * c,
            bytes_accessed=n * c * itemsize + n * 4 + num_tiles * 4,
        ),
    )(outputs, labels2d)

    loss = jnp.sum(partials) / jnp.float32(n)
    return loss, {'loss': loss}


if __name__ == "__main__":
    key = jax.random.PRNGKey(0)
    k_logits, k_labels = jax.random.split(key)

    # Small batch of 8 samples, 32 classes (single exact block).
    N, C = 8, 32
    outputs = jax.random.normal(k_logits, (N, C), dtype=jnp.float32)
    labels = jax.random.randint(k_labels, (N,), 0, C, dtype=jnp.int32)

    loss, loss_stats = cla_loss(outputs, labels, use_pallas=True)
    loss = jax.block_until_ready(loss)

    ref = jnp.mean(jax.nn.logsumexp(outputs, axis=-1)
                   - outputs[jnp.arange(N), labels])
    assert jnp.allclose(loss, ref, atol=1e-5, rtol=1e-5), (loss, ref)

    # Ragged-N path: N=13 with an 8-row tile -> two grid steps, partial last
    # block (no wrapper padding copy); exercises the in-kernel row masking.
    N2 = 13
    outputs2 = jax.random.normal(jax.random.PRNGKey(1), (N2, C), dtype=jnp.float32)
    labels2 = jax.random.randint(jax.random.PRNGKey(2), (N2,), 0, C, dtype=jnp.int32)
    loss2, _ = cla_loss(outputs2, labels2, use_pallas=True, tile_n_cap=8)
    loss2 = jax.block_until_ready(loss2)
    ref2 = jnp.mean(jax.nn.logsumexp(outputs2, axis=-1)
                    - outputs2[jnp.arange(N2), labels2])
    assert jnp.allclose(loss2, ref2, atol=1e-5, rtol=1e-5), (loss2, ref2)

    print("KERNEL_OK")
</pallas_src>

<mosaic_0001>
module attributes {stable_mosaic.version = 11 : i64} {
  func.func @_cla_loss_kernel(%arg0: i32, %arg1: memref<8x32xf32, #tpu.memory_space<vmem>>, %arg2: memref<8x1xi32, #tpu.memory_space<vmem>>, %arg3: memref<1x1xf32, #tpu.memory_space<smem>>) attributes {dimension_semantics = [#tpu.dimension_semantics<parallel>], iteration_bounds = array<i64: 1>, scalar_prefetch = 0 : i64, scratch_operands = 0 : i64, tpu.core_type = #tpu.core_type<tc>, window_params = [{transform_indices = @transform_0, window_bounds = array<i64: 8, 32>}, {transform_indices = @transform_1, window_bounds = array<i64: 8, 1>}, {transform_indices = @transform_2, window_bounds = array<i64: 1, 1>}]} {
    %c0 = arith.constant 0 : index
    %c0_0 = arith.constant 0 : index
    %0 = vector.load %arg1[%c0, %c0_0] : memref<8x32xf32, #tpu.memory_space<vmem>>, vector<8x32xf32>
    %c0_1 = arith.constant 0 : index
    %c0_2 = arith.constant 0 : index
    %1 = vector.load %arg2[%c0_1, %c0_2] : memref<8x1xi32, #tpu.memory_space<vmem>>, vector<8x1xi32>
    %c8_i32 = arith.constant 8 : i32
    %2 = arith.muli %arg0, %c8_i32 : i32
    %3 = tpu.iota {dimensions = array<i32: 0>} : vector<8x1xi32>
    %4 = vector.broadcast %2 : i32 to vector<8x1xi32>
    %5 = arith.addi %4, %3 : vector<8x1xi32>
    %c8_i32_3 = arith.constant 8 : i32
    %6 = vector.broadcast %c8_i32_3 : i32 to vector<8x1xi32>
    %7 = arith.cmpi slt, %5, %6 : vector<8x1xi32>
    %cst = arith.constant dense<0xFF800000> : vector<8xf32>
    %8 = vector.multi_reduction <maximumf>, %0, %cst [1] : vector<8x32xf32> to vector<8xf32>
    %9 = vector.shape_cast %8 : vector<8xf32> to vector<8x1xf32>
    %10 = vector.broadcast %9 : vector<8x1xf32> to vector<8x32xf32>
    %11 = arith.subf %0, %10 : vector<8x32xf32>
    %12 = math.exp %11 : vector<8x32xf32>
    %cst_4 = arith.constant dense<0.000000e+00> : vector<8xf32>
    %13 = vector.multi_reduction <add>, %12, %cst_4 [1] : vector<8x32xf32> to vector<8xf32>
    %14 = vector.shape_cast %13 : vector<8xf32> to vector<8x1xf32>
    %15 = math.log %14 : vector<8x1xf32>
    %16 = arith.addf %15, %9 : vector<8x1xf32>
    %17 = tpu.iota {dimensions = array<i32: 1>} : vector<1x32xi32>
    %18 = vector.broadcast %17 : vector<1x32xi32> to vector<8x32xi32>
    %19 = vector.broadcast %1 : vector<8x1xi32> to vector<8x32xi32>
    %20 = arith.cmpi eq, %18, %19 : vector<8x32xi32>
    %cst_5 = arith.constant 0.000000e+00 : f32
    %21 = vector.broadcast %cst_5 : f32 to vector<8x32xf32>
    %22 = arith.select %20, %0, %21 : vector<8x32xi1>, vector<8x32xf32>
    %cst_6 = arith.constant dense<0.000000e+00> : vector<8xf32>
    %23 = vector.multi_reduction <add>, %22, %cst_6 [1] : vector<8x32xf32> to vector<8xf32>
    %24 = vector.shape_cast %23 : vector<8xf32> to vector<8x1xf32>
    %25 = arith.subf %16, %24 : vector<8x1xf32>
    %cst_7 = arith.constant 0.000000e+00 : f32
    %26 = vector.broadcast %cst_7 : f32 to vector<8x1xf32>
    %27 = arith.select %7, %25, %26 : vector<8x1xi1>, vector<8x1xf32>
    %28 = vector.shape_cast %27 : vector<8x1xf32> to vector<1x8x1xf32>
    %cst_8 = arith.constant dense<0.000000e+00> : vector<1xf32>
    %29 = vector.multi_reduction <add>, %28, %cst_8 [1, 2] : vector<1x8x1xf32> to vector<1xf32>
    %30 = vector.shape_cast %29 : vector<1xf32> to vector<1x1x1xf32>
    %31 = vector.extract %30[0, 0, 0] : f32 from vector<1x1x1xf32>
    %c0_9 = arith.constant 0 : index
    %c0_10 = arith.constant 0 : index
    %32 = memref.load %arg3[%c0_9, %c0_10] : memref<1x1xf32, #tpu.memory_space<smem>>
    memref.store %31, %arg3[%c0_9, %c0_10] : memref<1x1xf32, #tpu.memory_space<smem>>
    return
  }
  func.func @transform_0(%arg0: i32) -> (i32, i32) {
    %c0_i32 = arith.constant 0 : i32
    %c0_i32_0 = arith.constant 0 : i32
    return %arg0, %c0_i32 : i32, i32
  }
  func.func @transform_1(%arg0: i32) -> (i32, i32) {
    %c0_i32 = arith.constant 0 : i32
    %c0_i32_0 = arith.constant 0 : i32
    return %arg0, %c0_i32 : i32, i32
  }
  func.func @transform_2(%arg0: i32) -> (i32, i32) {
    %c0_i32 = arith.constant 0 : i32
    %c0_i32_0 = arith.constant 0 : i32
    return %arg0, %c0_i32 : i32, i32
  }
}

</mosaic_0001>

<llo_original>
// kernel: tpu_custom_call.1
$region0: #{tpu_custom_call.1}
  #allocation0 [shape = 'u32[]', space=smem, size = 0x4, offset = 0x4, fixed_abs, tag = 'smem constant byte address 0x4 - core index']
  #allocation1 [shape = 'u32[144,128]{1,0:T(1,128)}', space=vmem, size = 0x12000, scoped, tag = 'internal scratch']
  %s0 = inlined_call_operand.vmem [shape: f32[8,32], index: 0, kind: input, shape index: {}]
  %s1 = inlined_call_operand.vmem [shape: s32[8,1], index: 1, kind: input, shape index: {}]
  %s2 = inlined_call_operand.hbm [shape: f32[1,1], index: 2, kind: output, shape index: {}]
  %s3 = sld [smem:[#allocation0]]
  $region18: #{tpu_custom_call.1} parent=0
    _
  %s5 = ssub.s32 1, %s3
  %s6 = scalar_select 0, %s5, %s3
  $region1: #{tpu_custom_call.1} parent=0
    #allocation2 [shape = 'u8[512]{0}', space=smem, size = 0x200, scoped, tag = 'output window, operand 0, single buffered']
    #allocation3 [shape = 's32[1]{0}', space=sflag, size = 0x4, scoped, tag = 'scoped memory for tpu_custom_call.1']
    %7 = vsyncpa [#allocation3], 0
    // Predicated region
    $region2: #{tpu_custom_call.1} parent=1 // pred_check
      _
    $region3: #{tpu_custom_call.1} parent=1 // pred_check_branch
      %9 = sbr.rel (0) target = $region5
    $region4: #{tpu_custom_call.1} parent=1 // pred_region
      _
    $region5: #{tpu_custom_call.1} parent=1 // pred_fallthru
      _
    // Predicated region
    $region6: #{tpu_custom_call.1} parent=1 // pred_check
      _
    $region7: #{tpu_custom_call.1} parent=1 // pred_check_branch
      %11 = sbr.rel (0) target = $region9
    $region8: #{tpu_custom_call.1} parent=1 // pred_region
      _
    $region9: #{tpu_custom_call.1} parent=1 // pred_fallthru
      _
    %v12 = vld [vmem:[%s0] sm:$0xff]
    %v13 = vld [vmem:[%s1] sm:$0xff]
    %s14 = smul.u32 0, 8
    %v15 = vlaneseq
    %v16 = vshrl.u32 %v15, 7
    %v17 = vstv %s14
    %v18 = vadd.s32 %v17, %v16
    %vm19 = vcmp.lt.s32.totalorder %v18, 8
    %vm20 = vcmask 261120
    %v21 = vsel %vm20, %v12, -inf
    %22 = vmax.xlane.f32.xlu0 %v21
    %v23 = vpop.xlane.xlu0 %22
    %v24 = vsub.f32 %v12, %v23
    %v25 = vmul.f32 %v24, 1.442695
    %v26 = vpow.pop %v25
    %v27 = vsel %vm20, %v26, 0.0
    %28 = vadd.xlane.f32.xlu0 %v27
    %v29 = vpop.xlane.xlu0 %28
    %v30 = vlog2.pop %v29
    %v31 = vmul.f32 %v30, 0.6931472
    %v32 = vadd.f32 %v31, %v23
    %v33 = vlaneseq
    %v34 = vand.u32 %v33, 127
    %35 = vset.pattern.permute.xlu0 0
    %36 = vperm.xlu0 %35, %v13
    %v37 = vpop.permute.xlu0 %36
    %vm38 = vcmp.eq.s32.totalorder %v34, %v37
    %v39 = vsel %vm38, %v12, 0.0
    %v40 = vsel %vm20, %v39, 0.0
    %41 = vadd.xlane.f32.xlu0 %v40
    %v42 = vpop.xlane.xlu0 %41
    %v43 = vsub.f32 %v32, %v42
    %v44 = vsel %vm19, %v43, 0.0
    %vm45 = vcmask 7168
    %v46 = vsel %vm45, %v44, 0.0
    %47 = vadd.xlane.f32.xlu0 %v46
    %v48 = vpop.xlane.xlu0 %47
    %v49 = vrot.slane %v48, 4
    %v50 = vadd.f32 %v48, %v49
    %v51 = vrot.slane %v50, 2
    %v52 = vadd.f32 %v50, %v51
    %v53 = vrot.slane %v52, 1
    %v54 = vadd.f32 %v52, %v53
    %s55 = vtos %v54
    %s56 = scalar_lea.smem [#allocation2], 0
    %57 = sst [smem:[%s56]] %s55
    // Predicated region
    $region10: #{tpu_custom_call.1} parent=1 // pred_check
      _
    $region11: #{tpu_custom_call.1} parent=1 // pred_check_branch
      %59 = sbr.rel (0) target = $region13
    $region12: #{tpu_custom_call.1} parent=1 // pred_region
      %s61 = ssub.s32 16, 16
      %62 = vsyncadd [#allocation3], %s61
      %65 = dma.smem_to_hbm [#allocation2], 16, %s2, [#allocation3]
    $region13: #{tpu_custom_call.1} parent=1 // pred_fallthru
      _
    // Predicated region
    $region14: #{tpu_custom_call.1} parent=1 // pred_check
      _
    $region15: #{tpu_custom_call.1} parent=1 // pred_check_branch
      %67 = sbr.rel (0) target = $region17
    $region16: #{tpu_custom_call.1} parent=1 // pred_region
      %68 = dma.done [#allocation3], 16
    $region17: #{tpu_custom_call.1} parent=1 // pred_fallthru
      _
    %69 = sfence
    %70 = vsyncpa [#allocation3], 1

</llo_original>
